<compile_context>
chip_gen: v5e
topology: v5e:2x2
jax: 0.10.0
libtpu: 0.0.40
codegen_flags: <defaults>
</compile_context>

<pallas_src>
import jax
import jax.numpy as jnp
import numpy as np
from jax import lax
from jax.experimental import pallas as pl
from jax.experimental.pallas import tpu as pltpu


def _round_up(x, m):
    return (x + m - 1) // m * m


def _vmem_limit(bytes_needed):
    # Explicit scoped-VMEM limit with ~50% headroom, clamped to sane bounds.
    return int(min(64 * 2 ** 20, max(4 * 2 ** 20, int(bytes_needed * 1.5))))


# ----------------------------------------------------------------------------
# Large-vocab path: table stays in HBM, per-row async DMA gather.
# ----------------------------------------------------------------------------

def _dma_gather_kernel(ids_ref, table_hbm, out_ref, sem):
    # ids_ref:   SMEM (total_pad,) int32   (scalar prefetch)
    # table_hbm: ANY  (V, Ht)              (stays in HBM)
    # out_ref:   VMEM (T, Ht)              (rows DMA'd straight into it)
    T = out_ref.shape[0]
    base = pl.program_id(0) * T

    def issue(i, carry):
        tok = ids_ref[base + i]
        pltpu.make_async_copy(table_hbm.at[pl.ds(tok, 1)],
                              out_ref.at[pl.ds(i, 1)],
                              sem.at[0]).start()
        return carry

    lax.fori_loop(0, T, issue, 0, unroll=8)

    # Aggregated wait: every row copy signals sem[0]; one descriptor covering
    # the full (T, Ht) destination accounts for the sum of all row transfers.
    # (Requires T <= V; the wrapper guarantees this.)
    pltpu.make_async_copy(table_hbm.at[pl.ds(0, T)], out_ref, sem.at[0]).wait()


def _gather_hbm(ids, table):
    bs, S = ids.shape
    V, Ht = table.shape
    dtype = table.dtype
    itemsize = jnp.dtype(dtype).itemsize
    total = bs * S

    # <=512 rows per step, multiple of 8, aim for >=2 grid steps (v7x has 2 TCs).
    T = min(512, _round_up(max(total // 2, 8), 8))
    if V >= 8:
        T = max(8, min(T, (V // 8) * 8))   # keep aggregated-wait source in-bounds
    total_pad = _round_up(total, T)
    ids_flat = jnp.pad(ids.reshape(-1), (0, total_pad - total))

    grid_spec = pltpu.PrefetchScalarGridSpec(
        num_scalar_prefetch=1,
        grid=(total_pad // T,),
        in_specs=[pl.BlockSpec(memory_space=pl.ANY)],           # table in HBM
        out_specs=pl.BlockSpec((T, Ht), lambda i, ids_s: (i, 0)),
        scratch_shapes=[pltpu.SemaphoreType.DMA((1,))],
    )
    emb_flat = pl.pallas_call(
        _dma_gather_kernel,
        out_shape=jax.ShapeDtypeStruct((total_pad, Ht), dtype),
        grid_spec=grid_spec,
        compiler_params=pltpu.CompilerParams(
            dimension_semantics=("parallel",),
            vmem_limit_bytes=_vmem_limit(2 * T * Ht * itemsize)),
    )(ids_flat, table)
    return emb_flat[:total].reshape(bs, S, Ht)


def _dma_gather_mix_kernel(ids_ref, table_hbm, mix_ref, out_ref, emb_buf, sem):
    # ids_ref:   SMEM (bs*S,) int32        (scalar prefetch)
    # table_hbm: ANY  (V, Ht)              (stays in HBM)
    # mix_ref:   VMEM (1, tq, S) bf16
    # out_ref:   VMEM (1, tq, Ht)
    # emb_buf:   VMEM (2, S, Ht)           (double-buffered gathered RHS)
    b = pl.program_id(0)
    q = pl.program_id(1)
    nb = pl.num_programs(0)
    S = emb_buf.shape[1]
    slot = b % 2

    def issue_gather(batch_idx, slot_idx):
        base = batch_idx * S

        def issue(i, carry):
            tok = ids_ref[base + i]
            pltpu.make_async_copy(table_hbm.at[pl.ds(tok, 1)],
                                  emb_buf.at[slot_idx, pl.ds(i, 1)],
                                  sem.at[slot_idx]).start()
            return carry

        lax.fori_loop(0, S, issue, 0, unroll=8)

    @pl.when(jnp.logical_and(b == 0, q == 0))
    def _():
        issue_gather(0, 0)          # prologue: first batch cannot be overlapped

    @pl.when(q == 0)
    def _():
        # Aggregated wait for this batch's S row copies (sum of bytes == full
        # (S, Ht) slab), then prefetch batch b+1 so its gather DMAs overlap
        # this batch's n_q MXU matmuls.
        pltpu.make_async_copy(table_hbm.at[pl.ds(0, S)],
                              emb_buf.at[slot], sem.at[slot]).wait()

        @pl.when(b + 1 < nb)
        def _():
            issue_gather(b + 1, 1 - slot)

    # bf16 MXU matmul (mix already bf16 from the wrapper), f32 accumulation.
    out_ref[0] = jnp.dot(mix_ref[0],
                         emb_buf[slot].astype(jnp.bfloat16),
                         preferred_element_type=jnp.float32).astype(out_ref.dtype)


def _gather_mix_hbm(ids, table, mix):
    bs, S = ids.shape
    V, Ht = table.shape
    dtype = table.dtype
    itemsize = jnp.dtype(dtype).itemsize
    ids_flat = ids.reshape(-1)
    mix_bf16 = mix.astype(jnp.bfloat16)    # halves the mix BlockSpec DMA bytes

    # q-tile: largest MXU-friendly divisor of S (keeps per-step VMEM bounded on
    # v7x while feeding the MXU >=128-row tiles at production S).
    tq = S
    for cand in (512, 256, 128, 64, 32, 16, 8):
        if S % cand == 0:
            tq = cand
            break
    n_q = S // tq

    footprint = (2 * S * Ht * itemsize                       # double-buffered gather
                 + 2 * (tq * S * 2 + tq * Ht * itemsize))    # pipelined mix/out blocks

    grid_spec = pltpu.PrefetchScalarGridSpec(
        num_scalar_prefetch=1,
        grid=(bs, n_q),
        in_specs=[pl.BlockSpec(memory_space=pl.ANY),         # table in HBM
                  pl.BlockSpec((1, tq, S), lambda b, q, ids_s: (b, q, 0))],
        out_specs=pl.BlockSpec((1, tq, Ht), lambda b, q, ids_s: (b, q, 0)),
        scratch_shapes=[pltpu.VMEM((2, S, Ht), dtype),
                        pltpu.SemaphoreType.DMA((2,))],
    )
    return pl.pallas_call(
        _dma_gather_mix_kernel,
        out_shape=jax.ShapeDtypeStruct((bs, S, Ht), dtype),
        grid_spec=grid_spec,
        compiler_params=pltpu.CompilerParams(
            # cross-step prefetch / scratch reuse => both axes arbitrary
            dimension_semantics=("arbitrary", "arbitrary"),
            vmem_limit_bytes=_vmem_limit(footprint)),
    )(ids_flat, table, mix_bf16)


# ----------------------------------------------------------------------------
# Small-vocab fast path: table resident in VMEM, in-VMEM row gather.
# ----------------------------------------------------------------------------

def _vmem_gather_kernel(ids_ref, table_ref, out_ref):
    # ids_ref:   SMEM (total_pad,) int32   (scalar prefetch)
    # table_ref: VMEM (V, Ht)              (resident: constant index map)
    # out_ref:   VMEM (T, Ht)
    T = out_ref.shape[0]
    base = pl.program_id(0) * T

    def copy_row(i, carry):
        tok = ids_ref[base + i]
        out_ref[pl.ds(i, 1), :] = table_ref[pl.ds(tok, 1), :]
        return carry

    lax.fori_loop(0, T, copy_row, 0, unroll=8)


def _gather_small(ids, table):
    bs, S = ids.shape
    V, Ht = table.shape
    dtype = table.dtype
    itemsize = jnp.dtype(dtype).itemsize
    total = bs * S
    T = min(256, _round_up(max(total // 2, 8), 8))
    total_pad = _round_up(total, T)
    ids_flat = jnp.pad(ids.reshape(-1), (0, total_pad - total))

    grid_spec = pltpu.PrefetchScalarGridSpec(
        num_scalar_prefetch=1,
        grid=(total_pad // T,),
        in_specs=[pl.BlockSpec((V, Ht), lambda i, ids_s: (0, 0))],   # resident table
        out_specs=pl.BlockSpec((T, Ht), lambda i, ids_s: (i, 0)),
    )
    emb_flat = pl.pallas_call(
        _vmem_gather_kernel,
        out_shape=jax.ShapeDtypeStruct((total_pad, Ht), dtype),
        grid_spec=grid_spec,
        compiler_params=pltpu.CompilerParams(
            dimension_semantics=("parallel",),
            vmem_limit_bytes=_vmem_limit((V * Ht + 2 * T * Ht) * itemsize)),
    )(ids_flat, table)
    return emb_flat[:total].reshape(bs, S, Ht)


def _vmem_gather_mix_kernel(ids_ref, table_ref, mix_ref, out_ref, emb_scratch):
    # ids_ref:     SMEM (bs*S,) int32
    # table_ref:   VMEM (V, Ht) resident
    # mix_ref:     VMEM (1, S, S) bf16
    # out_ref:     VMEM (1, S, Ht)
    # emb_scratch: VMEM (S, Ht)
    S = out_ref.shape[1]
    base = pl.program_id(0) * S

    def copy_row(i, carry):
        tok = ids_ref[base + i]
        emb_scratch[pl.ds(i, 1), :] = table_ref[pl.ds(tok, 1), :]
        return carry

    lax.fori_loop(0, S, copy_row, 0, unroll=8)
    out_ref[0] = jnp.dot(mix_ref[0],
                         emb_scratch[...].astype(jnp.bfloat16),
                         preferred_element_type=jnp.float32).astype(out_ref.dtype)


def _gather_mix_small(ids, table, mix):
    bs, S = ids.shape
    V, Ht = table.shape
    dtype = table.dtype
    itemsize = jnp.dtype(dtype).itemsize
    ids_flat = ids.reshape(-1)
    mix_bf16 = mix.astype(jnp.bfloat16)

    footprint = (V * Ht * itemsize + S * Ht * itemsize
                 + 2 * (S * S * 2 + S * Ht * itemsize))
    grid_spec = pltpu.PrefetchScalarGridSpec(
        num_scalar_prefetch=1,
        grid=(bs,),
        in_specs=[pl.BlockSpec((V, Ht), lambda b, ids_s: (0, 0)),    # resident table
                  pl.BlockSpec((1, S, S), lambda b, ids_s: (b, 0, 0))],
        out_specs=pl.BlockSpec((1, S, Ht), lambda b, ids_s: (b, 0, 0)),
        scratch_shapes=[pltpu.VMEM((S, Ht), dtype)],
    )
    return pl.pallas_call(
        _vmem_gather_mix_kernel,
        out_shape=jax.ShapeDtypeStruct((bs, S, Ht), dtype),
        grid_spec=grid_spec,
        compiler_params=pltpu.CompilerParams(
            dimension_semantics=("parallel",),
            vmem_limit_bytes=_vmem_limit(footprint)),
    )(ids_flat, table, mix_bf16)


# ----------------------------------------------------------------------------
# Public forward.
# ----------------------------------------------------------------------------

def embeddings_forward(input_ids, attention_mask, init_workspace, emb_table,
                       avg_token_mix=None, *,
                       vmem_table_budget_bytes=8 * 2 ** 20,
                       force_hbm_gather=False):
    """Eval-mode Embeddings.forward. Returns (workspace, embeddings).

    vmem_table_budget_bytes: threshold under which the embedding table is kept
      resident in VMEM (fast path). 8 MiB is conservative for v7x (64 MiB VMEM,
      32 MiB scoped default); it can be raised to ~32-48 MiB on v5e/v6e.
    force_hbm_gather: force the large-vocab HBM row-DMA path (for testing).
    """
    del attention_mask  # eval: variational dropout is identity
    bs, S = input_ids.shape
    _, W, Hw = init_workspace.shape
    V, Ht = emb_table.shape
    itemsize = jnp.dtype(emb_table.dtype).itemsize

    # Workspace broadcast handled by XLA — no kernel traffic.
    workspace = jnp.broadcast_to(init_workspace, (bs, W, Hw))

    # Clamp ids: an out-of-range / padding id maps to a valid row instead of an
    # OOB HBM DMA (TPU has no runtime bounds check). Intentional deviation from
    # PyTorch, which would raise.
    ids = jnp.clip(input_ids.astype(jnp.int32), 0, V - 1)

    small_table = (not force_hbm_gather) and (V * Ht * itemsize <= vmem_table_budget_bytes)

    if avg_token_mix is None:
        embeddings = _gather_small(ids, emb_table) if small_table \
            else _gather_hbm(ids, emb_table)
    else:
        embeddings = _gather_mix_small(ids, emb_table, avg_token_mix) if small_table \
            else _gather_mix_hbm(ids, emb_table, avg_token_mix)

    return workspace, embeddings


if __name__ == "__main__":
    # Module hyper-parameters (small, consistent with the forward pass).
    bs, S = 2, 8          # batch, sequence length
    W, Hw = 8, 32         # workspace_size, workspace_hidden_size
    V, Ht = 64, 128       # vocab_size, token_hidden_size (lane-dense rows)

    key = jax.random.PRNGKey(0)
    k_ws, k_tab, k_ids, k_mix = jax.random.split(key, 4)

    # Deterministic parameter init mirroring reset_parameters():
    # normal_() then divide by std(dim=-1, keepdim=True) (torch std -> ddof=1).
    init_workspace = jax.random.normal(k_ws, (1, W, Hw), jnp.float32)
    init_workspace = init_workspace / jnp.std(init_workspace, axis=-1, keepdims=True, ddof=1)
    emb_table = jax.random.normal(k_tab, (V, Ht), jnp.float32)
    emb_table = emb_table / jnp.std(emb_table, axis=-1, keepdims=True, ddof=1)

    input_ids = jax.random.randint(k_ids, (bs, S), 0, V, dtype=jnp.int32)
    attention_mask = jnp.ones((bs, S), jnp.float32)
    avg_token_mix = jax.nn.softmax(
        jax.random.normal(k_mix, (bs, S, S), jnp.float32), axis=-1)

    # Plain-JAX references (eval-mode semantics).
    ws_ref = jnp.broadcast_to(init_workspace, (bs, W, Hw))
    gathered_ref = jnp.take(emb_table, input_ids, axis=0)
    emb_mix_ref = jnp.einsum("bst,bth->bsh", avg_token_mix, gathered_ref)

    results = {
        # Small-table fast paths (VMEM-resident table).
        "fast": embeddings_forward(input_ids, attention_mask, init_workspace, emb_table),
        "fast_mix": embeddings_forward(input_ids, attention_mask, init_workspace,
                                       emb_table, avg_token_mix),
        # Forced large-vocab paths (HBM row-DMA gather kernels).
        "dma": embeddings_forward(input_ids, attention_mask, init_workspace, emb_table,
                                  force_hbm_gather=True),
        "dma_mix": embeddings_forward(input_ids, attention_mask, init_workspace,
                                      emb_table, avg_token_mix, force_hbm_gather=True),
    }
    results = jax.block_until_ready(results)

    for name in ("fast", "dma"):
        ws, emb = results[name]
        np.testing.assert_allclose(np.asarray(ws), np.asarray(ws_ref), rtol=1e-6, atol=1e-6)
        np.testing.assert_allclose(np.asarray(emb), np.asarray(gathered_ref),
                                   rtol=1e-6, atol=1e-6)
    for name in ("fast_mix", "dma_mix"):
        ws, emb = results[name]
        np.testing.assert_allclose(np.asarray(ws), np.asarray(ws_ref), rtol=1e-6, atol=1e-6)
        np.testing.assert_allclose(np.asarray(emb), np.asarray(emb_mix_ref),
                                   rtol=2e-2, atol=2e-2)

    print("KERNEL_OK")
</pallas_src>

<mosaic_0001>
module attributes {stable_mosaic.version = 11 : i64} {
  func.func @_vmem_gather_kernel(%arg0: i32, %arg1: memref<16xi32, #tpu.memory_space<smem>>, %arg2: memref<64x128xf32, #tpu.memory_space<vmem>>, %arg3: memref<8x128xf32, #tpu.memory_space<vmem>>) attributes {dimension_semantics = [#tpu.dimension_semantics<parallel>], iteration_bounds = array<i64: 2>, scalar_prefetch = 1 : i64, scratch_operands = 0 : i64, tpu.core_type = #tpu.core_type<tc>, window_params = [{pipeline_mode = #tpu.pipeline_mode<synchronous>, transform_indices = @transform_0, window_bounds = array<i64: 64, 128>}, {transform_indices = @transform_1, window_bounds = array<i64: 8, 128>}]} {
    %c8_i32 = arith.constant 8 : i32
    %0 = arith.muli %arg0, %c8_i32 : i32
    %c0_i32 = arith.constant 0 : i32
    %1 = arith.addi %0, %c0_i32 : i32
    %2 = arith.index_cast %1 : i32 to index
    %3 = memref.load %arg1[%2] : memref<16xi32, #tpu.memory_space<smem>>
    %4 = arith.index_cast %3 : i32 to index
    %c0 = arith.constant 0 : index
    %5 = vector.load %arg2[%4, %c0] : memref<64x128xf32, #tpu.memory_space<vmem>>, vector<1x128xf32>
    %6 = arith.index_cast %c0_i32 : i32 to index
    %c0_0 = arith.constant 0 : index
    %7 = vector.load %arg3[%6, %c0_0] : memref<8x128xf32, #tpu.memory_space<vmem>>, vector<1x128xf32>
    tpu.vector_store %arg3[%6, %c0_0], %5 {strides = array<i32>} : memref<8x128xf32, #tpu.memory_space<vmem>>, vector<1x128xf32>,
    %c1_i32 = arith.constant 1 : i32
    %8 = arith.addi %0, %c1_i32 : i32
    %9 = arith.index_cast %8 : i32 to index
    %10 = memref.load %arg1[%9] : memref<16xi32, #tpu.memory_space<smem>>
    %11 = arith.index_cast %10 : i32 to index
    %c0_1 = arith.constant 0 : index
    %12 = vector.load %arg2[%11, %c0_1] : memref<64x128xf32, #tpu.memory_space<vmem>>, vector<1x128xf32>
    %13 = arith.index_cast %c1_i32 : i32 to index
    %c0_2 = arith.constant 0 : index
    %14 = vector.load %arg3[%13, %c0_2] : memref<8x128xf32, #tpu.memory_space<vmem>>, vector<1x128xf32>
    tpu.vector_store %arg3[%13, %c0_2], %12 {strides = array<i32>} : memref<8x128xf32, #tpu.memory_space<vmem>>, vector<1x128xf32>,
    %c2_i32 = arith.constant 2 : i32
    %15 = arith.addi %0, %c2_i32 : i32
    %16 = arith.index_cast %15 : i32 to index
    %17 = memref.load %arg1[%16] : memref<16xi32, #tpu.memory_space<smem>>
    %18 = arith.index_cast %17 : i32 to index
    %c0_3 = arith.constant 0 : index
    %19 = vector.load %arg2[%18, %c0_3] : memref<64x128xf32, #tpu.memory_space<vmem>>, vector<1x128xf32>
    %20 = arith.index_cast %c2_i32 : i32 to index
    %c0_4 = arith.constant 0 : index
    %21 = vector.load %arg3[%20, %c0_4] : memref<8x128xf32, #tpu.memory_space<vmem>>, vector<1x128xf32>
    tpu.vector_store %arg3[%20, %c0_4], %19 {strides = array<i32>} : memref<8x128xf32, #tpu.memory_space<vmem>>, vector<1x128xf32>,
    %c3_i32 = arith.constant 3 : i32
    %22 = arith.addi %0, %c3_i32 : i32
    %23 = arith.index_cast %22 : i32 to index
    %24 = memref.load %arg1[%23] : memref<16xi32, #tpu.memory_space<smem>>
    %25 = arith.index_cast %24 : i32 to index
    %c0_5 = arith.constant 0 : index
    %26 = vector.load %arg2[%25, %c0_5] : memref<64x128xf32, #tpu.memory_space<vmem>>, vector<1x128xf32>
    %27 = arith.index_cast %c3_i32 : i32 to index
    %c0_6 = arith.constant 0 : index
    %28 = vector.load %arg3[%27, %c0_6] : memref<8x128xf32, #tpu.memory_space<vmem>>, vector<1x128xf32>
    tpu.vector_store %arg3[%27, %c0_6], %26 {strides = array<i32>} : memref<8x128xf32, #tpu.memory_space<vmem>>, vector<1x128xf32>,
    %c4_i32 = arith.constant 4 : i32
    %29 = arith.addi %0, %c4_i32 : i32
    %30 = arith.index_cast %29 : i32 to index
    %31 = memref.load %arg1[%30] : memref<16xi32, #tpu.memory_space<smem>>
    %32 = arith.index_cast %31 : i32 to index
    %c0_7 = arith.constant 0 : index
    %33 = vector.load %arg2[%32, %c0_7] : memref<64x128xf32, #tpu.memory_space<vmem>>, vector<1x128xf32>
    %34 = arith.index_cast %c4_i32 : i32 to index
    %c0_8 = arith.constant 0 : index
    %35 = vector.load %arg3[%34, %c0_8] : memref<8x128xf32, #tpu.memory_space<vmem>>, vector<1x128xf32>
    tpu.vector_store %arg3[%34, %c0_8], %33 {strides = array<i32>} : memref<8x128xf32, #tpu.memory_space<vmem>>, vector<1x128xf32>,
    %c5_i32 = arith.constant 5 : i32
    %36 = arith.addi %0, %c5_i32 : i32
    %37 = arith.index_cast %36 : i32 to index
    %38 = memref.load %arg1[%37] : memref<16xi32, #tpu.memory_space<smem>>
    %39 = arith.index_cast %38 : i32 to index
    %c0_9 = arith.constant 0 : index
    %40 = vector.load %arg2[%39, %c0_9] : memref<64x128xf32, #tpu.memory_space<vmem>>, vector<1x128xf32>
    %41 = arith.index_cast %c5_i32 : i32 to index
    %c0_10 = arith.constant 0 : index
    %42 = vector.load %arg3[%41, %c0_10] : memref<8x128xf32, #tpu.memory_space<vmem>>, vector<1x128xf32>
    tpu.vector_store %arg3[%41, %c0_10], %40 {strides = array<i32>} : memref<8x128xf32, #tpu.memory_space<vmem>>, vector<1x128xf32>,
    %c6_i32 = arith.constant 6 : i32
    %43 = arith.addi %0, %c6_i32 : i32
    %44 = arith.index_cast %43 : i32 to index
    %45 = memref.load %arg1[%44] : memref<16xi32, #tpu.memory_space<smem>>
    %46 = arith.index_cast %45 : i32 to index
    %c0_11 = arith.constant 0 : index
    %47 = vector.load %arg2[%46, %c0_11] : memref<64x128xf32, #tpu.memory_space<vmem>>, vector<1x128xf32>
    %48 = arith.index_cast %c6_i32 : i32 to index
    %c0_12 = arith.constant 0 : index
    %49 = vector.load %arg3[%48, %c0_12] : memref<8x128xf32, #tpu.memory_space<vmem>>, vector<1x128xf32>
    tpu.vector_store %arg3[%48, %c0_12], %47 {strides = array<i32>} : memref<8x128xf32, #tpu.memory_space<vmem>>, vector<1x128xf32>,
    %c7_i32 = arith.constant 7 : i32
    %50 = arith.addi %0, %c7_i32 : i32
    %51 = arith.index_cast %50 : i32 to index
    %52 = memref.load %arg1[%51] : memref<16xi32, #tpu.memory_space<smem>>
    %53 = arith.index_cast %52 : i32 to index
    %c0_13 = arith.constant 0 : index
    %54 = vector.load %arg2[%53, %c0_13] : memref<64x128xf32, #tpu.memory_space<vmem>>, vector<1x128xf32>
    %55 = arith.index_cast %c7_i32 : i32 to index
    %c0_14 = arith.constant 0 : index
    %56 = vector.load %arg3[%55, %c0_14] : memref<8x128xf32, #tpu.memory_space<vmem>>, vector<1x128xf32>
    tpu.vector_store %arg3[%55, %c0_14], %54 {strides = array<i32>} : memref<8x128xf32, #tpu.memory_space<vmem>>, vector<1x128xf32>,
    %c8_i32_15 = arith.constant 8 : i32
    return
  }
  func.func @transform_0(%arg0: i32, %arg1: memref<16xi32, #tpu.memory_space<smem>>) -> (i32, i32) {
    %c0_i32 = arith.constant 0 : i32
    %c0_i32_0 = arith.constant 0 : i32
    %c0_i32_1 = arith.constant 0 : i32
    return %c0_i32, %c0_i32_0 : i32, i32
  }
  func.func @transform_1(%arg0: i32, %arg1: memref<16xi32, #tpu.memory_space<smem>>) -> (i32, i32) {
    %c0_i32 = arith.constant 0 : i32
    %c0_i32_0 = arith.constant 0 : i32
    return %arg0, %c0_i32 : i32, i32
  }
}

</mosaic_0001>

<llo_original>
// kernel: tpu_custom_call.1
$region0: #{tpu_custom_call.1}
  #allocation0 [shape = 'u32[]', space=smem, size = 0x4, offset = 0x4, fixed_abs, tag = 'smem constant byte address 0x4 - core index']
  #allocation1 [shape = 'u32[72,128]{1,0:T(1,128)}', space=vmem, size = 0x9000, scoped, tag = 'internal scratch']
  #allocation2 [shape = 's32[1]{0}', space=sflag, size = 0x4, scoped, tag = 'scoped memory for tpu_custom_call.1']
  #allocation3 [shape = 'u8[512]{0}', space=smem, size = 0x200, scoped, tag = 'prefetched SMEM operand 0']
  %s0 = inlined_call_operand.hbm [shape: s32[16], index: 0, kind: input, shape index: {}]
  %s1 = inlined_call_operand.hbm [shape: f32[64,128], index: 1, kind: input, shape index: {}]
  %s2 = inlined_call_operand.hbm [shape: f32[16,128], index: 2, kind: output, shape index: {}]
  %s3 = sld [smem:[#allocation0]]
  $region41: #{tpu_custom_call.1} parent=0
    _
  %s5 = ssub.s32 1, %s3
  %s6 = scalar_select 0, %s5, %s3
  %s8 = sshll.u32 %s0, 4
  %s9 = int_to_ptr.hbm [resolvable:$true] %s8
  %11 = dma.hbm_to_smem %s9, 16, [#allocation3], [#allocation2]
  %13 = dma.done [#allocation2], 16
  %14 = sfence
  $region1: #{tpu_custom_call.1} parent=0
    #allocation4 [shape = 'u8[32768]{0}', space=vmem, size = 0x8000, scoped, tag = 'input window, operand 1, single buffered']
    #allocation5 [shape = 's32[2]{0}', space=sflag, size = 0x8, scoped, tag = 'scoped memory for tpu_custom_call.1']
    #allocation6 [shape = 's32[2]{0}', space=sflag, size = 0x8, scoped, tag = 'scoped memory for tpu_custom_call.1']
    #allocation7 [shape = 'u8[8192]{0}', space=vmem, size = 0x2000, scoped, tag = 'output window, operand 0']
    %15 = vsyncpa [#allocation5], 0
    %16 = vsyncpa [#allocation6], 0
    %s17 = scalar_lea.sflag [#allocation6], 1
    %18 = vsyncpa %s17, 0
    loop: start=0, step=1, limit=4
    $region2: #{tpu_custom_call.1} parent=1 // loop_pre_header
      _
    $region3: #{tpu_custom_call.1} parent=1 // loop_header
      %s20 = sphi 0, %s24
      %p21 = scmp.ge.s32.totalorder %s20, 4
      %s28 = sphi 0, %s28
      %s30 = sphi 0, %s28
      %s31 = sphi 0, %s30
      %s45 = sphi 0, %s31
      %s51 = sphi 0, %s53
      %s54 = sphi 0, %s51
      %s55 = sphi 0, %s54
      %s71 = sphi 0, %s55
    $region4: #{tpu_custom_call.1} parent=1 // loop_header_branch
      %23 = sbr.rel (%p21) target = $region8
    $region5: #{tpu_custom_call.1} parent=1 // loop_body
      %s25 = ssub.s32 %s20, 1
      %s26 = ssub.s32 %s20, 2
      %s27 = sadd.s32 %s20, 1
      %s29 = sadd.s32 %s28, 1
      %p32 = scmp.eq.s32.totalorder %s20, 1
      %p33 = scmp.ne.s32.totalorder %s28, %s30
      %p34 = scmp.eq.s32.totalorder %s20, 0
      %p35 = por %p33, %p34
      %p36 = scmp.ne.s32.totalorder %s28, %s30
      %p37 = scmp.eq.s32.totalorder %s25, 1
      %p38 = por %p36, %p37
      %p39 = scmp.ne.s32.totalorder %s30, %s31
      %p40 = scmp.eq.s32.totalorder %s25, 0
      %p41 = por %p39, %p40
      %p42 = scmp.ne.s32.totalorder %s30, %s31
      %p43 = scmp.eq.s32.totalorder %s26, 1
      %p44 = por %p42, %p43
      %p46 = scmp.ne.s32.totalorder %s31, %s45
      %p47 = scmp.eq.s32.totalorder %s26, 0
      %p48 = por %p46, %p47
      %s49 = ssub.s32 %s20, %s27
      %p50 = scmp.eq.s32.totalorder %s49, 0
      %s52 = sadd.s32 %s51, 1
      %s53 = scalar_select %p50, %s51, %s52
      %p56 = pneg %p50
      %p57 = scmp.eq.s32.totalorder %s20, 1
      %p58 = por %p56, %p57
      %p59 = scmp.ne.s32.totalorder %s51, %s54
      %p60 = scmp.eq.s32.totalorder %s20, 0
      %p61 = por %p59, %p60
      %p62 = scmp.ne.s32.totalorder %s51, %s54
      %p63 = scmp.eq.s32.totalorder %s25, 1
      %p64 = por %p62, %p63
      %p65 = scmp.ne.s32.totalorder %s54, %s55
      %p66 = scmp.eq.s32.totalorder %s25, 0
      %p67 = por %p65, %p66
      %p68 = scmp.ne.s32.totalorder %s54, %s55
      %p69 = scmp.eq.s32.totalorder %s26, 1
      %p70 = por %p68, %p69
      %p72 = scmp.ne.s32.totalorder %s55, %s71
      %p73 = scmp.eq.s32.totalorder %s26, 0
      %p74 = por %p72, %p73
      %p75 = scmp.le.s32.totalorder 1, %s20
      %p76 = scmp.lt.s32.totalorder %s20, 3
      %p77 = pnand %p75, %p76
      %p78 = pneg %p77
      // Predicated region
      $region9: #{tpu_custom_call.1} parent=5 // pred_check
        _
      $region10: #{tpu_custom_call.1} parent=5 // pred_check_branch
        %80 = sbr.rel (%p77) target = $region12
      $region11: #{tpu_custom_call.1} parent=5 // pred_region
        %s81 = ssub.s32 %s20, 1
        // Predicated region
        $region13: #{tpu_custom_call.1} parent=11 // pred_check
          %p82 = pneg %p41
        $region14: #{tpu_custom_call.1} parent=11 // pred_check_branch
          %84 = sbr.rel (%p82) target = $region16
        $region15: #{tpu_custom_call.1} parent=11 // pred_region
          %86 = vsyncadd [#allocation5], 0
          %s87 = sshll.u32 %s1, 4
          %s88 = int_to_ptr.hbm [resolvable:$true] %s87
          %s89 = sshll.u32 [#allocation4], 4
          %s90 = int_to_ptr.vmem [resolvable:$true] %s89
          %95 = dma.hbm_to_vmem [thread:$0]  %s88, 1024, %s90, [#allocation5], 128, 128, 8
        $region16: #{tpu_custom_call.1} parent=11 // pred_fallthru
          _
      $region12: #{tpu_custom_call.1} parent=5 // pred_fallthru
        _
      %p96 = scmp.lt.s32.totalorder %s20, 2
      // Predicated region
      $region17: #{tpu_custom_call.1} parent=5 // pred_check
        %p97 = pneg %p96
      $region18: #{tpu_custom_call.1} parent=5 // pred_check_branch
        %99 = sbr.rel (%p97) target = $region20
      $region19: #{tpu_custom_call.1} parent=5 // pred_region
        _
      $region20: #{tpu_custom_call.1} parent=5 // pred_fallthru
        _
      %p100 = scmp.le.s32.totalorder 1, %s20
      %p101 = scmp.lt.s32.totalorder %s20, 3
      %p102 = pnand %p100, %p101
      %p103 = pneg %p102
      // Predicated region
      $region21: #{tpu_custom_call.1} parent=5 // pred_check
        _
      $region22: #{tpu_custom_call.1} parent=5 // pred_check_branch
        %105 = sbr.rel (%p102) target = $region24
      $region23: #{tpu_custom_call.1} parent=5 // pred_region
        %s106 = ssub.s32 %s20, 1
        // Predicated region
        $region25: #{tpu_custom_call.1} parent=23 // pred_check
          %p107 = pneg %p41
        $region26: #{tpu_custom_call.1} parent=23 // pred_check_branch
          %109 = sbr.rel (%p107) target = $region28
        $region27: #{tpu_custom_call.1} parent=23 // pred_region
          %111 = dma.done [#allocation5], 1024
        $region28: #{tpu_custom_call.1} parent=23 // pred_fallthru
          _
        %p112 = pneg %p41
        %p113 = pneg %p38
        %p114 = pneg %p67
        %p115 = pneg %p64
        %s116 = sand.u32 %s54, 1
        %s117 = scalar_lea.sflag [#allocation6], %s116
        %s118 = sand.u32 %s54, 1
        %s119 = smul.addr %s118, 8
        %s120 = scalar_lea.vmem [#allocation7], %s119
        %s121 = smul.u32 %s25, 8
        %s122 = sld [smem:[#allocation3 + %s121]]
        %s123 = scalar_lea.vmem [#allocation4], %s122
        %v124 = vld [vmem:[%s123] sm:$0x1]
        %125 = vst [vmem:[%s120] sm:$0x1] %v124
        %s126 = sadd.s32 %s121, 1
        %s127 = sld [smem:[#allocation3 + %s126]]
        %s128 = scalar_lea.vmem [#allocation4], %s127
        %v129 = vld [vmem:[%s128] sm:$0x1]
        %130 = vst [vmem:[%s120 + $0x1] sm:$0x1] %v129
        %s131 = sadd.s32 %s121, 2
        %s132 = sld [smem:[#allocation3 + %s131]]
        %s133 = scalar_lea.vmem [#allocation4], %s132
        %v134 = vld [vmem:[%s133] sm:$0x1]
        %135 = vst [vmem:[%s120 + $0x2] sm:$0x1] %v134
        %s136 = sadd.s32 %s121, 3
        %s137 = sld [smem:[#allocation3 + %s136]]
        %s138 = scalar_lea.vmem [#allocation4], %s137
        %v139 = vld [vmem:[%s138] sm:$0x1]
        %140 = vst [vmem:[%s120 + $0x3] sm:$0x1] %v139
        %s141 = sadd.s32 %s121, 4
        %s142 = sld [smem:[#allocation3 + %s141]]
        %s143 = scalar_lea.vmem [#allocation4], %s142
        %v144 = vld [vmem:[%s143] sm:$0x1]
        %145 = vst [vmem:[%s120 + $0x4] sm:$0x1] %v144
        %s146 = sadd.s32 %s121, 5
        %s147 = sld [smem:[#allocation3 + %s146]]
        %s148 = scalar_lea.vmem [#allocation4], %s147
        %v149 = vld [vmem:[%s148] sm:$0x1]
        %150 = vst [vmem:[%s120 + $0x5] sm:$0x1] %v149
        %s151 = sadd.s32 %s121, 6
        %s152 = sld [smem:[#allocation3 + %s151]]
        %s153 = scalar_lea.vmem [#allocation4], %s152
        %v154 = vld [vmem:[%s153] sm:$0x1]
        %155 = vst [vmem:[%s120 + $0x6] sm:$0x1] %v154
        %s156 = sadd.s32 %s121, 7
        %s157 = sld [smem:[#allocation3 + %s156]]
        %s158 = scalar_lea.vmem [#allocation4], %s157
        %v159 = vld [vmem:[%s158] sm:$0x1]
        %160 = vst [vmem:[%s120 + $0x7] sm:$0x1] %v159
        %s161 = sand.u32 %s54, 1
        %s162 = scalar_lea.sflag [#allocation6], %s161
        %s163 = sand.u32 %s54, 1
        %s164 = smul.addr %s163, 8
        %s165 = scalar_lea.vmem [#allocation7], %s164
        // Predicated region
        $region29: #{tpu_custom_call.1} parent=23 // pred_check
          %p166 = pneg %p64
        $region30: #{tpu_custom_call.1} parent=23 // pred_check_branch
          %168 = sbr.rel (%p166) target = $region32
        $region31: #{tpu_custom_call.1} parent=23 // pred_region
          %170 = vsyncadd %s162, 0
          %s171 = smul.addr %s25, 8
          %s172 = scalar_lea.hbm %s2, %s171
          %s174 = sshll.u32 %s165, 4
          %s175 = int_to_ptr.vmem [resolvable:$true] %s174
          %s176 = sshll.u32 %s172, 4
          %s177 = int_to_ptr.hbm [resolvable:$true] %s176
          %179 = dma.vmem_to_hbm [thread:$0]  %s175, 128, %s177, %s162
        $region32: #{tpu_custom_call.1} parent=23 // pred_fallthru
          _
      $region24: #{tpu_custom_call.1} parent=5 // pred_fallthru
        _
      %p180 = scmp.le.s32.totalorder 2, %s20
      // Predicated region
      $region33: #{tpu_custom_call.1} parent=5 // pred_check
        %p181 = pneg %p180
      $region34: #{tpu_custom_call.1} parent=5 // pred_check_branch
        %183 = sbr.rel (%p181) target = $region36
      $region35: #{tpu_custom_call.1} parent=5 // pred_region
        %s184 = ssub.s32 %s20, 2
        // Predicated region
        $region37: #{tpu_custom_call.1} parent=35 // pred_check
          %p185 = pneg %p70
        $region38: #{tpu_custom_call.1} parent=35 // pred_check_branch
          %187 = sbr.rel (%p185) target = $region40
        $region39: #{tpu_custom_call.1} parent=35 // pred_region
          %s188 = sand.u32 %s55, 1
          %s189 = scalar_lea.sflag [#allocation6], %s188
          %s190 = sand.u32 %s55, 1
          %s191 = smul.addr %s190, 8
          %s192 = scalar_lea.vmem [#allocation7], %s191
          %194 = dma.done %s189, 128
        $region40: #{tpu_custom_call.1} parent=35 // pred_fallthru
          _
      $region36: #{tpu_custom_call.1} parent=5 // pred_fallthru
        _
    $region6: #{tpu_custom_call.1} parent=1 // loop_footer
      %s24 = sadd.s32 1, %s20
    $region7: #{tpu_custom_call.1} parent=1 // loop_footer_branch
      %19 = sbr.rel target = $region3
    $region8: #{tpu_custom_call.1} parent=1 // loop_exit
      _
    %195 = vsyncpa [#allocation5], 1
    %s196 = scalar_lea.sflag [#allocation5], 1
    %197 = vsyncpa %s196, 1
    %198 = vsyncpa [#allocation6], 1
    %s199 = scalar_lea.sflag [#allocation6], 1
    %200 = vsyncpa %s199, 1

</llo_original>
